<compile_context>
chip_gen: v7x
topology: tpu7x:2x2x1
jax: 0.10.0
libtpu: 0.0.40
codegen_flags: <defaults>
</compile_context>

<pallas_src>
import functools

import jax
import jax.numpy as jnp
from jax import lax
from jax.experimental import pallas as pl
from jax.experimental.pallas import tpu as pltpu


def linear_packed_kernel(packed_ref, o_ref, *, batch, out_features):
    # packed_ref: (batch + out_features + 1, IN) f32
    #   rows [0, batch)                      -> x        (batch, IN)
    #   rows [batch, batch+out_features)     -> weight   (OUT, IN)  [out, in]
    #   row  [batch+out_features]            -> bias     (1, OUT)   (IN == OUT)
    x = packed_ref[pl.ds(0, batch), :]
    w = packed_ref[pl.ds(batch, out_features), :]
    b = packed_ref[pl.ds(batch + out_features, 1), :]

    # y[b, o] = sum_i x[b, i] * w[o, i]  — contract IN vs IN, no transpose.
    y = lax.dot_general(
        x, w,
        dimension_numbers=(((1,), (1,)), ((), ())),
        preferred_element_type=jnp.float32,
    )
    o_ref[...] = (y + b).astype(o_ref.dtype)


@jax.jit
def simple_model_forward(x, weight, bias):
    """y = x @ weight.T + bias  (matches torch.nn.Linear semantics)."""
    B, IN = x.shape
    OUT = weight.shape[0]
    assert weight.shape == (OUT, IN)
    # The single-operand packing below relies on IN == OUT (true for 8 -> 8).
    assert IN == OUT, "packed-operand path assumes square linear layer"

    # One packed operand -> one input DMA instead of three tiny ones.
    packed = jnp.concatenate(
        [x, weight, bias.reshape(1, OUT)], axis=0
    ).astype(jnp.float32)                            # (B + OUT + 1, IN)

    vmem = pltpu.MemorySpace.VMEM
    kernel = functools.partial(
        linear_packed_kernel, batch=B, out_features=OUT)

    return pl.pallas_call(
        kernel,
        out_shape=jax.ShapeDtypeStruct((B, OUT), x.dtype),
        # No grid: single invocation, whole arrays resident in VMEM.
        in_specs=[pl.BlockSpec(memory_space=vmem)],   # packed (x | W | b)
        out_specs=pl.BlockSpec(memory_space=vmem),
        cost_estimate=pl.CostEstimate(
            flops=2 * B * IN * OUT,
            transcendentals=0,
            bytes_accessed=4 * ((B + OUT + 1) * IN + B * OUT),
        ),
    )(packed)
    # TODO(synk): if this layer ever matters for perf, fuse it into the
    # producer kernel (epilogue) or batch the rows and tile only the batch
    # axis (TB ~ 512-2048, grid=(cdiv(B,TB),), dimension_semantics=
    # ("parallel",), bf16 inputs) so v7x's second TensorCore is used.


if __name__ == "__main__":
    key = jax.random.PRNGKey(0)
    k_x, k_w, k_b = jax.random.split(key, 3)

    IN_FEATURES = 8
    OUT_FEATURES = 8
    BATCH = 8

    # Deterministic input (matches x = torch.randn(8, 8) in spirit).
    x = jax.random.normal(k_x, (BATCH, IN_FEATURES), dtype=jnp.float32)

    # Deterministic nn.Linear-style init: U(-1/sqrt(in), 1/sqrt(in)).
    bound = 1.0 / (IN_FEATURES ** 0.5)
    weight = jax.random.uniform(
        k_w, (OUT_FEATURES, IN_FEATURES), dtype=jnp.float32,
        minval=-bound, maxval=bound)
    bias = jax.random.uniform(
        k_b, (OUT_FEATURES,), dtype=jnp.float32, minval=-bound, maxval=bound)

    y = simple_model_forward(x, weight, bias)
    jax.block_until_ready(y)

    # Cross-check against plain JAX reference.
    y_ref = x @ weight.T + bias
    assert jnp.allclose(y, y_ref, atol=1e-5, rtol=1e-5), "mismatch vs reference"

    print("KERNEL_OK")
</pallas_src>

<mosaic_0001>
module attributes {stable_mosaic.version = 11 : i64} {
  func.func @linear_packed_kernel(%arg0: memref<17x8xf32, #tpu.memory_space<vmem>>, %arg1: memref<8x8xf32, #tpu.memory_space<vmem>>) attributes {dimension_semantics = [], scalar_prefetch = 0 : i64, scratch_operands = 0 : i64, tpu.core_type = #tpu.core_type<tc>} {
    %c0 = arith.constant 0 : index
    %c0_0 = arith.constant 0 : index
    %0 = vector.load %arg0[%c0, %c0_0] : memref<17x8xf32, #tpu.memory_space<vmem>>, vector<8x8xf32>
    %c8 = arith.constant 8 : index
    %c0_1 = arith.constant 0 : index
    %1 = vector.load %arg0[%c8, %c0_1] : memref<17x8xf32, #tpu.memory_space<vmem>>, vector<8x8xf32>
    %c16 = arith.constant 16 : index
    %c0_2 = arith.constant 0 : index
    %2 = vector.load %arg0[%c16, %c0_2] : memref<17x8xf32, #tpu.memory_space<vmem>>, vector<1x8xf32>
    %cst = arith.constant dense<0.000000e+00> : vector<8x8xf32>
    %3 = tpu.matmul %0, %1, %cst {dimension_numbers = #tpu.dot_dimension_numbers<[1], [1], [0], [0], [0, 0, 1, 0], [], []>} : vector<8x8xf32>, vector<8x8xf32>, vector<8x8xf32> -> vector<8x8xf32>
    %4 = vector.broadcast %2 : vector<1x8xf32> to vector<8x8xf32>
    %5 = arith.addf %3, %4 : vector<8x8xf32>
    %c0_3 = arith.constant 0 : index
    %c0_4 = arith.constant 0 : index
    %6 = vector.load %arg1[%c0_3, %c0_4] : memref<8x8xf32, #tpu.memory_space<vmem>>, vector<8x8xf32>
    tpu.vector_store %arg1[%c0_3, %c0_4], %5 {strides = array<i32>} : memref<8x8xf32, #tpu.memory_space<vmem>>, vector<8x8xf32>,
    return
  }
}

</mosaic_0001>

<llo_original>
// kernel: simple_model_forward.1
$region0: #{simple_model_forward.1}
  #allocation0 [shape = 'u32[]', space=smem, size = 0x4, offset = 0x4, fixed_abs, tag = 'smem constant byte address 0x4 - core index']
  #allocation1 [shape = 'u32[144,128]{1,0:T(1,128)}', space=vmem, size = 0x12000, scoped, tag = 'internal scratch']
  %s0 = inlined_call_operand.vmem [shape: f32[17,8], index: 0, kind: input, shape index: {}]
  %s1 = inlined_call_operand.hbm [shape: f32[8,8], index: 1, kind: output, shape index: {}]
  %s2 = sld [smem:[#allocation0]]
  $region14: #{simple_model_forward.1} parent=0
    _
  %s4 = ssub.s32 1, %s2
  %s5 = scalar_select 0, %s4, %s2
  $region1: #{simple_model_forward.1} parent=0
    #allocation2 [shape = 'u8[4096]{0}', space=vmem, size = 0x1000, scoped, tag = 'output window, operand 0, single buffered']
    #allocation3 [shape = 's32[1]{0}', space=sflag, size = 0x4, scoped, tag = 'scoped memory for simple_model_forward.1']
    %6 = vsyncpa [#allocation3], 0
    // Predicated region
    $region2: #{simple_model_forward.1} parent=1 // pred_check
      _
    $region3: #{simple_model_forward.1} parent=1 // pred_check_branch
      %8 = sbr.rel (0) target = $region5
    $region4: #{simple_model_forward.1} parent=1 // pred_region
      _
    $region5: #{simple_model_forward.1} parent=1 // pred_fallthru
      _
    %v9 = vld [vmem:[%s0] sm:$0xff]
    %v10 = vld [vmem:[%s0 + $0x8] sm:$0xff]
    %v11 = vld [vmem:[%s0 + $0x10] sm:$0x1]
    %v12 = vlaneseq
    %v13 = vshrl.u32 %v12, 7
    %v14 = vsub.s32 0, %v13
    %v15 = vrot.slane %v11, %v14
    %vm16 = vcmask 64512
    %v18 = vsel %vm16, %v9, 0
    %v21 = vsel %vm16, %v10, 0
    %23 = vmatprep.subr.mxu0 0.0
    %24 = vmatpush1.xpose.msra.mxu0 %v21
    %25 = vmatprep.subr.mxu0 0.0
    %26 = vmatpush1.xpose.msra.mxu0 0.0
    %27 = vmatprep.subr.mxu0 0.0
    %28 = vmatpush1.xpose.msra.mxu0 0.0
    %29 = vmatprep.subr.mxu0 0.0
    %30 = vmatpush1.xpose.msra.mxu0 0.0
    %31 = vmatprep.subr.mxu0 0.0
    %32 = vmatpush1.xpose.msra.mxu0 0.0
    %33 = vmatprep.subr.mxu0 0.0
    %34 = vmatpush1.xpose.msra.mxu0 0.0
    %35 = vmatprep.subr.mxu0 0.0
    %36 = vmatpush1.xpose.msra.mxu0 0.0
    %37 = vmatprep.subr.mxu0 0.0
    %38 = vmatpush1.xpose.msra.mxu0 0.0
    %39 = vmatprep.subr.mxu0 0.0
    %40 = vmatpush1.xpose.msra.mxu0 0.0
    %41 = vmatprep.subr.mxu0 0.0
    %42 = vmatpush1.xpose.msra.mxu0 0.0
    %43 = vmatprep.subr.mxu0 0.0
    %44 = vmatpush1.xpose.msra.mxu0 0.0
    %45 = vmatprep.subr.mxu0 0.0
    %46 = vmatpush1.xpose.msra.mxu0 0.0
    %47 = vmatprep.subr.mxu0 0.0
    %48 = vmatpush1.xpose.msra.mxu0 0.0
    %49 = vmatprep.subr.mxu0 0.0
    %50 = vmatpush1.xpose.msra.mxu0 0.0
    %51 = vmatprep.subr.mxu0 0.0
    %52 = vmatpush1.xpose.msra.mxu0 0.0
    %53 = vmatprep.subr.mxu0 0.0
    %54 = vmatpush1.xpose.msra.mxu0 0.0
    %55 = vmatprep.subr.mxu0 0.0
    %56 = vmatpush1.xpose.msra.mxu0 0.0
    %57 = vmatprep.subr.mxu0 0.0
    %58 = vmatpush1.xpose.msra.mxu0 0.0
    %59 = vmatprep.subr.mxu0 0.0
    %60 = vmatpush1.xpose.msra.mxu0 0.0
    %61 = vmatprep.subr.mxu0 0.0
    %62 = vmatpush1.xpose.msra.mxu0 0.0
    %63 = vmatprep.subr.mxu0 0.0
    %64 = vmatpush1.xpose.msra.mxu0 0.0
    %65 = vmatprep.subr.mxu0 0.0
    %66 = vmatpush1.xpose.msra.mxu0 0.0
    %67 = vmatprep.subr.mxu0 0.0
    %68 = vmatpush1.xpose.msra.mxu0 0.0
    %69 = vmatprep.subr.mxu0 0.0
    %70 = vmatpush1.xpose.msra.mxu0 0.0
    %71 = vmatprep.subr.mxu0 0.0
    %72 = vmatpush1.xpose.msra.mxu0 0.0
    %73 = vmatprep.subr.mxu0 0.0
    %74 = vmatpush1.xpose.msra.mxu0 0.0
    %75 = vmatprep.subr.mxu0 0.0
    %76 = vmatpush1.xpose.msra.mxu0 0.0
    %77 = vmatprep.subr.mxu0 0.0
    %78 = vmatpush1.xpose.msra.mxu0 0.0
    %79 = vmatprep.subr.mxu0 0.0
    %80 = vmatpush1.xpose.msra.mxu0 0.0
    %81 = vmatprep.subr.mxu0 0.0
    %82 = vmatpush1.xpose.msra.mxu0 0.0
    %83 = vmatprep.subr.mxu0 0.0
    %84 = vmatpush1.xpose.msra.mxu0 0.0
    %85 = vmatprep.subr.mxu0 0.0
    %86 = vmatpush1.xpose.msra.mxu0 0.0
    %87 = vmatprep.mubr.f32.mxu0 0.0
    %88 = vmatmul.mubr.f32.gmra.mrb[0].mxu0 %v18
    %v89 = vpop.f32.mrb[0].mxu0
    %v90 = vadd.f32 %v15, %v89
    %v91 = vpop.f32.mrb[0].mxu0
    %92 = vdwg.mxu0
    %93 = vst.msk [vmem:[#allocation2] sm:$0xff] %vm16, %v90
    // Predicated region
    $region6: #{simple_model_forward.1} parent=1 // pred_check
      _
    $region7: #{simple_model_forward.1} parent=1 // pred_check_branch
      %95 = sbr.rel (0) target = $region9
    $region8: #{simple_model_forward.1} parent=1 // pred_region
      %s97 = ssub.s32 128, 128
      %98 = vsyncadd [#allocation3], %s97
      %s100 = sshll.u32 [#allocation2], 4
      %s101 = int_to_ptr.vmem [resolvable:$true] %s100
      %103 = dma.vmem_to_hbm [thread:$0]  %s101, 128, %s1, [#allocation3]
    $region9: #{simple_model_forward.1} parent=1 // pred_fallthru
      _
    // Predicated region
    $region10: #{simple_model_forward.1} parent=1 // pred_check
      _
    $region11: #{simple_model_forward.1} parent=1 // pred_check_branch
      %105 = sbr.rel (0) target = $region13
    $region12: #{simple_model_forward.1} parent=1 // pred_region
      %106 = dma.done [#allocation3], 128
    $region13: #{simple_model_forward.1} parent=1 // pred_fallthru
      _
    %107 = vsyncpa [#allocation3], 1

</llo_original>
